<compile_context>
chip_gen: v7x
topology: tpu7x:2x2x1
jax: 0.10.0
libtpu: 0.0.40
codegen_flags: <defaults>
</compile_context>

<pallas_src>
import jax
import jax.numpy as jnp
from jax.experimental import pallas as pl
from jax.experimental.pallas import tpu as pltpu

# ---------------- sizes (small, synthetic) ----------------------------------
B = 2            # batch
T = 16           # time frames
D = 32           # input_dim
C = 32           # num_channels
K = 7            # depthwise_conv_kernel_size (odd)
PAD = (K - 1) // 2

LN_EPS = 1e-5
BN_EPS = 1e-5

# ---------------- packed parameter slab layout -------------------------------
# One contiguous f32 slab of shape (NROWS, SLAB_W); every matrix section starts
# on a multiple-of-8 row so all in-kernel slices are sublane aligned, and every
# vector parameter (scale AND bias) sits at lane 0 of its own row so broadcasts
# against lane-0 activations need no lane rotation.
SLAB_W = 2 * C                  # 64 lanes
ROW_LN_W = 0                    # row 0: ln_w  at lanes 0:D
ROW_LN_B = 1                    # row 1: ln_b  at lanes 0:D
ROW_BN_W = 2                    # row 2: bn_w  at lanes 0:C
ROW_BN_B = 3                    # row 3: bn_b  at lanes 0:C
ROW_W1 = 8                      # rows  8..39 : W1 (D, 2C)  pointwise conv 1 (fused GLU halves)
ROW_DW = ROW_W1 + D             # rows 40..46 : dw (K, C)   depthwise filter taps
ROW_W2 = 48                     # rows 48..79 : W2 (C, D)   pointwise conv 2
NROWS = ROW_W2 + C              # 80

assert 2 * C <= SLAB_W and D <= SLAB_W
assert ROW_W1 % 8 == 0 and ROW_DW % 8 == 0 and ROW_W2 % 8 == 0
assert ROW_DW + K <= ROW_W2 and ROW_W2 + C == NROWS


# ---------------- Pallas kernel ----------------------------------------------
def conv_module_kernel(x_ref, p_ref, o_ref):
    # ---- static parameter views from the packed slab (free slices) ----
    ln_w = p_ref[ROW_LN_W:ROW_LN_W + 1, 0:D]               # (1, D)  lane-0 aligned
    ln_b = p_ref[ROW_LN_B:ROW_LN_B + 1, 0:D]               # (1, D)  lane-0 aligned
    bn_w = p_ref[ROW_BN_W:ROW_BN_W + 1, 0:C]               # (1, C)  lane-0 aligned
    bn_b = p_ref[ROW_BN_B:ROW_BN_B + 1, 0:C]               # (1, C)  lane-0 aligned
    w1 = p_ref[ROW_W1:ROW_W1 + D, :]                       # (D, 2C) fused GLU projection
    dw = p_ref[ROW_DW:ROW_DW + K, 0:C]                     # (K, C)  depthwise taps
    w2 = p_ref[ROW_W2:ROW_W2 + C, 0:D]                     # (C, D)

    # ---- flat (B*T, D) working layout ----
    x = x_ref[...].astype(jnp.float32)                     # (B*T, D)

    # LayerNorm over the feature dimension (f32 VPU math).
    mu = jnp.mean(x, axis=-1, keepdims=True)
    var = jnp.mean((x - mu) ** 2, axis=-1, keepdims=True)
    xn = (x - mu) * jax.lax.rsqrt(var + LN_EPS) * ln_w + ln_b

    # Pointwise Conv1d(D -> 2C, kernel 1, no bias) fused for both GLU halves.
    # bf16 operands (MXU-native on v5e/v6e/v7x), f32 accumulation.
    h2 = jnp.dot(xn.astype(jnp.bfloat16), w1.astype(jnp.bfloat16),
                 preferred_element_type=jnp.float32)        # (B*T, 2C)
    a = h2[:, 0:C]
    g = h2[:, C:2 * C]
    h = a * jax.nn.sigmoid(g)                               # (B*T, C)  GLU

    # Depthwise Conv1d over time, SAME zero padding:
    # K statically unrolled taps -> XLU sublane roll + boundary mask + VPU FMA.
    # conv[b, t] = sum_k h[b, t + k - PAD] * dw[k]   (zero outside [0, T)).
    # Rolling the flat (B*T, C) array is exact: any cross-batch / wrapped row
    # lands only where the SAME-padding mask is zero.
    t_idx = jax.lax.broadcasted_iota(jnp.int32, (B * T, 1), 0) % T   # per-row time index
    conv = h * dw[PAD:PAD + 1, :]                           # center tap (d = 0)
    for k in range(K):
        d = k - PAD
        if d == 0:
            continue
        rolled = pltpu.roll(h, shift=(-d) % (B * T), axis=0)          # rolled[r] = h[r + d]
        mask = (t_idx >= max(0, -d)) & (t_idx < min(T, T - d))        # valid 0 <= t + d < T
        conv = conv + jnp.where(mask, rolled, 0.0) * dw[k:k + 1, :]   # (B*T, C)

    # BatchNorm1d (training-mode batch statistics over (B, T), biased variance).
    bmu = jnp.mean(conv, axis=0, keepdims=True)             # (1, C)
    bvar = jnp.mean((conv - bmu) ** 2, axis=0, keepdims=True)
    y = (conv - bmu) * jax.lax.rsqrt(bvar + BN_EPS) * bn_w + bn_b

    # SiLU, then pointwise Conv1d(C -> D, kernel 1, no bias), bf16 MXU operands.
    y = y * jax.nn.sigmoid(y)
    out = jnp.dot(y.astype(jnp.bfloat16), w2.astype(jnp.bfloat16),
                  preferred_element_type=jnp.float32)        # (B*T, D)

    # Dropout(p=0.0) is identity.
    o_ref[...] = out.astype(o_ref.dtype)


# ---------------- cost model (kept in sync with the roll-based depthwise) ----
_FLOPS = (2 * B * T * D * (2 * C)          # fused GLU projection matmul
          + 2 * K * B * T * C              # depthwise: K taps of FMA
          + 2 * B * T * C * D              # output pointwise matmul
          + 10 * B * T * (D + C))          # norms / activations (rough)
_TRANS = 2 * B * T * C + B * T + C         # sigmoids (GLU + SiLU) + rsqrts
_BYTES = (2 * B * T * D + NROWS * SLAB_W) * 4


# ---------------- wrapper -----------------------------------------------------
def conv_module_pallas(x, param_slab):
    # Wrapper-side flatten (free, contiguous row-major) -> flat working layout.
    x2 = x.reshape(B * T, D)
    out2 = pl.pallas_call(
        conv_module_kernel,
        out_shape=jax.ShapeDtypeStruct((B * T, D), jnp.float32),
        in_specs=[pl.BlockSpec(memory_space=pltpu.MemorySpace.VMEM),
                  pl.BlockSpec(memory_space=pltpu.MemorySpace.VMEM)],
        out_specs=pl.BlockSpec(memory_space=pltpu.MemorySpace.VMEM),
        cost_estimate=pl.CostEstimate(flops=_FLOPS, transcendentals=_TRANS,
                                      bytes_accessed=_BYTES),
    )(x2, param_slab)
    return out2.reshape(B, T, D)


# ---------------- parameter construction & packing ---------------------------
def make_params(key):
    """Parameters in math layout. Torch mapping:
       w1  (D, 2C) = Conv1d(D, 2C, 1).weight[:, :, 0].T
       dw_w (K, C) = Conv1d(C, C, K, groups=C).weight[:, 0, :].T
       w2  (C, D)  = Conv1d(C, D, 1).weight[:, :, 0].T
    """
    ks = jax.random.split(key, 7)

    def n(k, shape, s):
        return (s * jax.random.normal(k, shape)).astype(jnp.float32)

    return {
        "ln_w": 1.0 + n(ks[0], (D,), 0.1),
        "ln_b": n(ks[1], (D,), 0.05),
        "w1": n(ks[2], (D, 2 * C), 0.15),
        "dw_w": n(ks[3], (K, C), 0.2),
        "bn_w": 1.0 + n(ks[4], (C,), 0.1),
        "bn_b": n(ks[5], (C,), 0.05),
        "w2": n(ks[6], (C, D), 0.15),
    }


def pack_params(p):
    slab = jnp.zeros((NROWS, SLAB_W), jnp.float32)
    slab = slab.at[ROW_LN_W, 0:D].set(p["ln_w"])
    slab = slab.at[ROW_LN_B, 0:D].set(p["ln_b"])
    slab = slab.at[ROW_BN_W, 0:C].set(p["bn_w"])
    slab = slab.at[ROW_BN_B, 0:C].set(p["bn_b"])
    slab = slab.at[ROW_W1:ROW_W1 + D, :].set(p["w1"])
    slab = slab.at[ROW_DW:ROW_DW + K, 0:C].set(p["dw_w"])
    slab = slab.at[ROW_W2:ROW_W2 + C, 0:D].set(p["w2"])
    return slab


# ---------------- pure-JAX reference (independent padding-based depthwise) ---
# Matmul operands are cast to bf16 to match the kernel's MXU precision policy;
# everything else (norms, GLU, depthwise conv, SiLU) is f32 and structured
# completely differently from the kernel (padded slices, no rolls).
def conv_module_ref(x, p):
    mu = jnp.mean(x, axis=-1, keepdims=True)
    var = jnp.mean((x - mu) ** 2, axis=-1, keepdims=True)
    xn = (x - mu) * jax.lax.rsqrt(var + LN_EPS) * p["ln_w"] + p["ln_b"]

    h2 = jnp.einsum("btd,de->bte", xn.astype(jnp.bfloat16),
                    p["w1"].astype(jnp.bfloat16),
                    preferred_element_type=jnp.float32)
    a, g = h2[..., :C], h2[..., C:]
    h = a * jax.nn.sigmoid(g)

    hp = jnp.pad(h, ((0, 0), (PAD, PAD), (0, 0)))
    conv = jnp.zeros((B, T, C), jnp.float32)
    for k in range(K):
        conv = conv + hp[:, k:k + T, :] * p["dw_w"][k][None, None, :]

    bmu = jnp.mean(conv, axis=(0, 1), keepdims=True)
    bvar = jnp.mean((conv - bmu) ** 2, axis=(0, 1), keepdims=True)
    y = (conv - bmu) * jax.lax.rsqrt(bvar + BN_EPS) * p["bn_w"] + p["bn_b"]
    y = y * jax.nn.sigmoid(y)
    return jnp.einsum("btc,cd->btd", y.astype(jnp.bfloat16),
                      p["w2"].astype(jnp.bfloat16),
                      preferred_element_type=jnp.float32)


if __name__ == "__main__":
    key = jax.random.PRNGKey(0)
    kx, kp = jax.random.split(key)
    x = jax.random.normal(kx, (B, T, D), dtype=jnp.float32)

    params = make_params(kp)
    slab = pack_params(params)

    out = conv_module_pallas(x, slab)
    out = jax.block_until_ready(out)

    ref = conv_module_ref(x, params)
    assert out.shape == (B, T, D)
    assert bool(jnp.all(jnp.isfinite(out)))
    err = float(jnp.max(jnp.abs(out - ref)))
    assert err < 5e-3, f"mismatch vs JAX reference: {err}"
    print("KERNEL_OK")
</pallas_src>

<mosaic_0001>
module attributes {stable_mosaic.version = 11 : i64} {
  func.func @conv_module_kernel(%arg0: memref<32x32xf32, #tpu.memory_space<vmem>>, %arg1: memref<80x64xf32, #tpu.memory_space<vmem>>, %arg2: memref<32x32xf32, #tpu.memory_space<vmem>>) attributes {dimension_semantics = [], scalar_prefetch = 0 : i64, scratch_operands = 0 : i64, tpu.core_type = #tpu.core_type<tc>} {
    %c0 = arith.constant 0 : index
    %c0_0 = arith.constant 0 : index
    %0 = vector.load %arg1[%c0, %c0_0] : memref<80x64xf32, #tpu.memory_space<vmem>>, vector<1x32xf32>
    %c1 = arith.constant 1 : index
    %c0_1 = arith.constant 0 : index
    %1 = vector.load %arg1[%c1, %c0_1] : memref<80x64xf32, #tpu.memory_space<vmem>>, vector<1x32xf32>
    %c2 = arith.constant 2 : index
    %c0_2 = arith.constant 0 : index
    %2 = vector.load %arg1[%c2, %c0_2] : memref<80x64xf32, #tpu.memory_space<vmem>>, vector<1x32xf32>
    %c3 = arith.constant 3 : index
    %c0_3 = arith.constant 0 : index
    %3 = vector.load %arg1[%c3, %c0_3] : memref<80x64xf32, #tpu.memory_space<vmem>>, vector<1x32xf32>
    %c8 = arith.constant 8 : index
    %c0_4 = arith.constant 0 : index
    %4 = vector.load %arg1[%c8, %c0_4] : memref<80x64xf32, #tpu.memory_space<vmem>>, vector<32x64xf32>
    %c40 = arith.constant 40 : index
    %c0_5 = arith.constant 0 : index
    %5 = vector.load %arg1[%c40, %c0_5] : memref<80x64xf32, #tpu.memory_space<vmem>>, vector<7x32xf32>
    %c48 = arith.constant 48 : index
    %c0_6 = arith.constant 0 : index
    %6 = vector.load %arg1[%c48, %c0_6] : memref<80x64xf32, #tpu.memory_space<vmem>>, vector<32x32xf32>
    %c0_7 = arith.constant 0 : index
    %c0_8 = arith.constant 0 : index
    %7 = vector.load %arg0[%c0_7, %c0_8] : memref<32x32xf32, #tpu.memory_space<vmem>>, vector<32x32xf32>
    %cst = arith.constant dense<0.000000e+00> : vector<32xf32>
    %8 = vector.multi_reduction <add>, %7, %cst [1] : vector<32x32xf32> to vector<32xf32>
    %9 = vector.shape_cast %8 : vector<32xf32> to vector<32x1xf32>
    %cst_9 = arith.constant 3.200000e+01 : f32
    %10 = vector.broadcast %cst_9 : f32 to vector<32x1xf32>
    %11 = arith.divf %9, %10 : vector<32x1xf32>
    %12 = vector.broadcast %11 : vector<32x1xf32> to vector<32x32xf32>
    %13 = arith.subf %7, %12 : vector<32x32xf32>
    %14 = arith.mulf %13, %13 : vector<32x32xf32>
    %cst_10 = arith.constant dense<0.000000e+00> : vector<32xf32>
    %15 = vector.multi_reduction <add>, %14, %cst_10 [1] : vector<32x32xf32> to vector<32xf32>
    %16 = vector.shape_cast %15 : vector<32xf32> to vector<32x1xf32>
    %cst_11 = arith.constant 3.200000e+01 : f32
    %17 = vector.broadcast %cst_11 : f32 to vector<32x1xf32>
    %18 = arith.divf %16, %17 : vector<32x1xf32>
    %19 = vector.broadcast %11 : vector<32x1xf32> to vector<32x32xf32>
    %20 = arith.subf %7, %19 : vector<32x32xf32>
    %cst_12 = arith.constant 9.99999974E-6 : f32
    %21 = vector.broadcast %cst_12 : f32 to vector<32x1xf32>
    %22 = arith.addf %18, %21 : vector<32x1xf32>
    %23 = math.rsqrt %22 : vector<32x1xf32>
    %24 = vector.broadcast %23 : vector<32x1xf32> to vector<32x32xf32>
    %25 = arith.mulf %20, %24 : vector<32x32xf32>
    %26 = vector.broadcast %0 : vector<1x32xf32> to vector<32x32xf32>
    %27 = arith.mulf %25, %26 : vector<32x32xf32>
    %28 = vector.broadcast %1 : vector<1x32xf32> to vector<32x32xf32>
    %29 = arith.addf %27, %28 : vector<32x32xf32>
    %30 = arith.truncf %29 : vector<32x32xf32> to vector<32x32xbf16>
    %31 = arith.truncf %4 : vector<32x64xf32> to vector<32x64xbf16>
    %cst_13 = arith.constant dense<0.000000e+00> : vector<32x64xf32>
    %32 = tpu.matmul %30, %31, %cst_13 {dimension_numbers = #tpu.dot_dimension_numbers<[1], [0], [0], [1], [0, 0, 1, 1], [], []>} : vector<32x32xbf16>, vector<32x64xbf16>, vector<32x64xf32> -> vector<32x64xf32>
    %33 = vector.extract_strided_slice %32 {offsets = [0, 0], sizes = [32, 32], strides = [1, 1]} : vector<32x64xf32> to vector<32x32xf32>
    %34 = vector.extract_strided_slice %32 {offsets = [0, 32], sizes = [32, 32], strides = [1, 1]} : vector<32x64xf32> to vector<32x32xf32>
    %35 = arith.negf %34 : vector<32x32xf32>
    %36 = math.exp %35 : vector<32x32xf32>
    %cst_14 = arith.constant 1.000000e+00 : f32
    %37 = vector.broadcast %cst_14 : f32 to vector<32x32xf32>
    %38 = arith.addf %37, %36 : vector<32x32xf32>
    %39 = arith.divf %37, %38 : vector<32x32xf32>
    %40 = arith.mulf %33, %39 : vector<32x32xf32>
    %41 = tpu.iota {dimensions = array<i32: 0>} : vector<32x1xi32>
    %c16_i32 = arith.constant 16 : i32
    %c0_i32 = arith.constant 0 : i32
    %42 = arith.cmpi eq, %c16_i32, %c0_i32 : i32
    %c1_i32 = arith.constant 1 : i32
    %43 = arith.select %42, %c1_i32, %c16_i32 : i32
    %44 = vector.broadcast %43 : i32 to vector<32x1xi32>
    %45 = arith.remsi %41, %44 : vector<32x1xi32>
    %c0_i32_15 = arith.constant 0 : i32
    %46 = vector.broadcast %c0_i32_15 : i32 to vector<32x1xi32>
    %47 = arith.cmpi ne, %45, %46 : vector<32x1xi32>
    %c0_i32_16 = arith.constant 0 : i32
    %48 = vector.broadcast %c0_i32_16 : i32 to vector<32x1xi32>
    %49 = arith.cmpi slt, %45, %48 : vector<32x1xi32>
    %c0_i32_17 = arith.constant 0 : i32
    %50 = arith.cmpi slt, %43, %c0_i32_17 : i32
    %51 = vector.broadcast %50 : i1 to vector<32x1xi1>
    %52 = vector.broadcast %51 : vector<32x1xi1> to vector<32x1xi1>
    %53 = arith.xori %49, %52 : vector<32x1xi1>
    %54 = arith.andi %53, %47 : vector<32x1xi1>
    %55 = vector.broadcast %43 : i32 to vector<32x1xi32>
    %56 = arith.addi %45, %55 : vector<32x1xi32>
    %57 = arith.select %54, %56, %45 : vector<32x1xi1>, vector<32x1xi32>
    %58 = vector.extract_strided_slice %5 {offsets = [3, 0], sizes = [1, 32], strides = [1, 1]} : vector<7x32xf32> to vector<1x32xf32>
    %59 = vector.broadcast %58 : vector<1x32xf32> to vector<32x32xf32>
    %60 = arith.mulf %40, %59 : vector<32x32xf32>
    %c3_i32 = arith.constant 3 : i32
    %61 = tpu.dynamic_rotate %40 by %c3_i32 dim 0 : vector<32x32xf32>, i32 -> vector<32x32xf32>
    %c3_i32_18 = arith.constant 3 : i32
    %62 = vector.broadcast %c3_i32_18 : i32 to vector<32x1xi32>
    %63 = arith.cmpi sge, %57, %62 : vector<32x1xi32>
    %c16_i32_19 = arith.constant 16 : i32
    %64 = vector.broadcast %c16_i32_19 : i32 to vector<32x1xi32>
    %65 = arith.cmpi slt, %57, %64 : vector<32x1xi32>
    %66 = arith.andi %63, %65 : vector<32x1xi1>
    %cst_20 = arith.constant 0.000000e+00 : f32
    %67 = vector.shape_cast %66 : vector<32x1xi1> to vector<32x1xi1>
    %68 = vector.broadcast %67 : vector<32x1xi1> to vector<32x32xi1>
    %69 = vector.broadcast %cst_20 : f32 to vector<32x32xf32>
    %70 = arith.select %68, %61, %69 : vector<32x32xi1>, vector<32x32xf32>
    %71 = vector.extract_strided_slice %5 {offsets = [0, 0], sizes = [1, 32], strides = [1, 1]} : vector<7x32xf32> to vector<1x32xf32>
    %72 = vector.broadcast %71 : vector<1x32xf32> to vector<32x32xf32>
    %73 = arith.mulf %70, %72 : vector<32x32xf32>
    %74 = arith.addf %60, %73 : vector<32x32xf32>
    %c2_i32 = arith.constant 2 : i32
    %75 = tpu.dynamic_rotate %40 by %c2_i32 dim 0 : vector<32x32xf32>, i32 -> vector<32x32xf32>
    %c2_i32_21 = arith.constant 2 : i32
    %76 = vector.broadcast %c2_i32_21 : i32 to vector<32x1xi32>
    %77 = arith.cmpi sge, %57, %76 : vector<32x1xi32>
    %c16_i32_22 = arith.constant 16 : i32
    %78 = vector.broadcast %c16_i32_22 : i32 to vector<32x1xi32>
    %79 = arith.cmpi slt, %57, %78 : vector<32x1xi32>
    %80 = arith.andi %77, %79 : vector<32x1xi1>
    %cst_23 = arith.constant 0.000000e+00 : f32
    %81 = vector.shape_cast %80 : vector<32x1xi1> to vector<32x1xi1>
    %82 = vector.broadcast %81 : vector<32x1xi1> to vector<32x32xi1>
    %83 = vector.broadcast %cst_23 : f32 to vector<32x32xf32>
    %84 = arith.select %82, %75, %83 : vector<32x32xi1>, vector<32x32xf32>
    %85 = vector.extract_strided_slice %5 {offsets = [1, 0], sizes = [1, 32], strides = [1, 1]} : vector<7x32xf32> to vector<1x32xf32>
    %86 = vector.broadcast %85 : vector<1x32xf32> to vector<32x32xf32>
    %87 = arith.mulf %84, %86 : vector<32x32xf32>
    %88 = arith.addf %74, %87 : vector<32x32xf32>
    %c1_i32_24 = arith.constant 1 : i32
    %89 = tpu.dynamic_rotate %40 by %c1_i32_24 dim 0 : vector<32x32xf32>, i32 -> vector<32x32xf32>
    %c1_i32_25 = arith.constant 1 : i32
    %90 = vector.broadcast %c1_i32_25 : i32 to vector<32x1xi32>
    %91 = arith.cmpi sge, %57, %90 : vector<32x1xi32>
    %c16_i32_26 = arith.constant 16 : i32
    %92 = vector.broadcast %c16_i32_26 : i32 to vector<32x1xi32>
    %93 = arith.cmpi slt, %57, %92 : vector<32x1xi32>
    %94 = arith.andi %91, %93 : vector<32x1xi1>
    %cst_27 = arith.constant 0.000000e+00 : f32
    %95 = vector.shape_cast %94 : vector<32x1xi1> to vector<32x1xi1>
    %96 = vector.broadcast %95 : vector<32x1xi1> to vector<32x32xi1>
    %97 = vector.broadcast %cst_27 : f32 to vector<32x32xf32>
    %98 = arith.select %96, %89, %97 : vector<32x32xi1>, vector<32x32xf32>
    %99 = vector.extract_strided_slice %5 {offsets = [2, 0], sizes = [1, 32], strides = [1, 1]} : vector<7x32xf32> to vector<1x32xf32>
    %100 = vector.broadcast %99 : vector<1x32xf32> to vector<32x32xf32>
    %101 = arith.mulf %98, %100 : vector<32x32xf32>
    %102 = arith.addf %88, %101 : vector<32x32xf32>
    %c31_i32 = arith.constant 31 : i32
    %103 = tpu.dynamic_rotate %40 by %c31_i32 dim 0 : vector<32x32xf32>, i32 -> vector<32x32xf32>
    %c0_i32_28 = arith.constant 0 : i32
    %104 = vector.broadcast %c0_i32_28 : i32 to vector<32x1xi32>
    %105 = arith.cmpi sge, %57, %104 : vector<32x1xi32>
    %c15_i32 = arith.constant 15 : i32
    %106 = vector.broadcast %c15_i32 : i32 to vector<32x1xi32>
    %107 = arith.cmpi slt, %57, %106 : vector<32x1xi32>
    %108 = arith.andi %105, %107 : vector<32x1xi1>
    %cst_29 = arith.constant 0.000000e+00 : f32
    %109 = vector.shape_cast %108 : vector<32x1xi1> to vector<32x1xi1>
    %110 = vector.broadcast %109 : vector<32x1xi1> to vector<32x32xi1>
    %111 = vector.broadcast %cst_29 : f32 to vector<32x32xf32>
    %112 = arith.select %110, %103, %111 : vector<32x32xi1>, vector<32x32xf32>
    %113 = vector.extract_strided_slice %5 {offsets = [4, 0], sizes = [1, 32], strides = [1, 1]} : vector<7x32xf32> to vector<1x32xf32>
    %114 = vector.broadcast %113 : vector<1x32xf32> to vector<32x32xf32>
    %115 = arith.mulf %112, %114 : vector<32x32xf32>
    %116 = arith.addf %102, %115 : vector<32x32xf32>
    %c30_i32 = arith.constant 30 : i32
    %117 = tpu.dynamic_rotate %40 by %c30_i32 dim 0 : vector<32x32xf32>, i32 -> vector<32x32xf32>
    %c0_i32_30 = arith.constant 0 : i32
    %118 = vector.broadcast %c0_i32_30 : i32 to vector<32x1xi32>
    %119 = arith.cmpi sge, %57, %118 : vector<32x1xi32>
    %c14_i32 = arith.constant 14 : i32
    %120 = vector.broadcast %c14_i32 : i32 to vector<32x1xi32>
    %121 = arith.cmpi slt, %57, %120 : vector<32x1xi32>
    %122 = arith.andi %119, %121 : vector<32x1xi1>
    %cst_31 = arith.constant 0.000000e+00 : f32
    %123 = vector.shape_cast %122 : vector<32x1xi1> to vector<32x1xi1>
    %124 = vector.broadcast %123 : vector<32x1xi1> to vector<32x32xi1>
    %125 = vector.broadcast %cst_31 : f32 to vector<32x32xf32>
    %126 = arith.select %124, %117, %125 : vector<32x32xi1>, vector<32x32xf32>
    %127 = vector.extract_strided_slice %5 {offsets = [5, 0], sizes = [1, 32], strides = [1, 1]} : vector<7x32xf32> to vector<1x32xf32>
    %128 = vector.broadcast %127 : vector<1x32xf32> to vector<32x32xf32>
    %129 = arith.mulf %126, %128 : vector<32x32xf32>
    %130 = arith.addf %116, %129 : vector<32x32xf32>
    %c29_i32 = arith.constant 29 : i32
    %131 = tpu.dynamic_rotate %40 by %c29_i32 dim 0 : vector<32x32xf32>, i32 -> vector<32x32xf32>
    %c0_i32_32 = arith.constant 0 : i32
    %132 = vector.broadcast %c0_i32_32 : i32 to vector<32x1xi32>
    %133 = arith.cmpi sge, %57, %132 : vector<32x1xi32>
    %c13_i32 = arith.constant 13 : i32
    %134 = vector.broadcast %c13_i32 : i32 to vector<32x1xi32>
    %135 = arith.cmpi slt, %57, %134 : vector<32x1xi32>
    %136 = arith.andi %133, %135 : vector<32x1xi1>
    %cst_33 = arith.constant 0.000000e+00 : f32
    %137 = vector.shape_cast %136 : vector<32x1xi1> to vector<32x1xi1>
    %138 = vector.broadcast %137 : vector<32x1xi1> to vector<32x32xi1>
    %139 = vector.broadcast %cst_33 : f32 to vector<32x32xf32>
    %140 = arith.select %138, %131, %139 : vector<32x32xi1>, vector<32x32xf32>
    %141 = vector.extract_strided_slice %5 {offsets = [6, 0], sizes = [1, 32], strides = [1, 1]} : vector<7x32xf32> to vector<1x32xf32>
    %142 = vector.broadcast %141 : vector<1x32xf32> to vector<32x32xf32>
    %143 = arith.mulf %140, %142 : vector<32x32xf32>
    %144 = arith.addf %130, %143 : vector<32x32xf32>
    %cst_34 = arith.constant dense<0.000000e+00> : vector<32xf32>
    %145 = vector.multi_reduction <add>, %144, %cst_34 [0] : vector<32x32xf32> to vector<32xf32>
    %146 = vector.shape_cast %145 : vector<32xf32> to vector<1x32xf32>
    %cst_35 = arith.constant 3.200000e+01 : f32
    %147 = vector.broadcast %cst_35 : f32 to vector<1x32xf32>
    %148 = arith.divf %146, %147 : vector<1x32xf32>
    %149 = vector.broadcast %148 : vector<1x32xf32> to vector<32x32xf32>
    %150 = arith.subf %144, %149 : vector<32x32xf32>
    %151 = arith.mulf %150, %150 : vector<32x32xf32>
    %cst_36 = arith.constant dense<0.000000e+00> : vector<32xf32>
    %152 = vector.multi_reduction <add>, %151, %cst_36 [0] : vector<32x32xf32> to vector<32xf32>
    %153 = vector.shape_cast %152 : vector<32xf32> to vector<1x32xf32>
    %cst_37 = arith.constant 3.200000e+01 : f32
    %154 = vector.broadcast %cst_37 : f32 to vector<1x32xf32>
    %155 = arith.divf %153, %154 : vector<1x32xf32>
    %156 = vector.broadcast %148 : vector<1x32xf32> to vector<32x32xf32>
    %157 = arith.subf %144, %156 : vector<32x32xf32>
    %cst_38 = arith.constant 9.99999974E-6 : f32
    %158 = vector.broadcast %cst_38 : f32 to vector<1x32xf32>
    %159 = arith.addf %155, %158 : vector<1x32xf32>
    %160 = math.rsqrt %159 : vector<1x32xf32>
    %161 = vector.broadcast %160 : vector<1x32xf32> to vector<32x32xf32>
    %162 = arith.mulf %157, %161 : vector<32x32xf32>
    %163 = vector.broadcast %2 : vector<1x32xf32> to vector<32x32xf32>
    %164 = arith.mulf %162, %163 : vector<32x32xf32>
    %165 = vector.broadcast %3 : vector<1x32xf32> to vector<32x32xf32>
    %166 = arith.addf %164, %165 : vector<32x32xf32>
    %167 = arith.negf %166 : vector<32x32xf32>
    %168 = math.exp %167 : vector<32x32xf32>
    %cst_39 = arith.constant 1.000000e+00 : f32
    %169 = vector.broadcast %cst_39 : f32 to vector<32x32xf32>
    %170 = arith.addf %169, %168 : vector<32x32xf32>
    %171 = arith.divf %169, %170 : vector<32x32xf32>
    %172 = arith.mulf %166, %171 : vector<32x32xf32>
    %173 = arith.truncf %172 : vector<32x32xf32> to vector<32x32xbf16>
    %174 = arith.truncf %6 : vector<32x32xf32> to vector<32x32xbf16>
    %cst_40 = arith.constant dense<0.000000e+00> : vector<32x32xf32>
    %175 = tpu.matmul %173, %174, %cst_40 {dimension_numbers = #tpu.dot_dimension_numbers<[1], [0], [0], [1], [0, 0, 1, 1], [], []>} : vector<32x32xbf16>, vector<32x32xbf16>, vector<32x32xf32> -> vector<32x32xf32>
    %c0_41 = arith.constant 0 : index
    %c0_42 = arith.constant 0 : index
    %176 = vector.load %arg2[%c0_41, %c0_42] : memref<32x32xf32, #tpu.memory_space<vmem>>, vector<32x32xf32>
    tpu.vector_store %arg2[%c0_41, %c0_42], %175 {strides = array<i32>} : memref<32x32xf32, #tpu.memory_space<vmem>>, vector<32x32xf32>,
    return
  }
}

</mosaic_0001>

<llo_original>
// kernel: tpu_custom_call.1
$region0: #{tpu_custom_call.1}
  #allocation0 [shape = 'u32[]', space=smem, size = 0x4, offset = 0x4, fixed_abs, tag = 'smem constant byte address 0x4 - core index']
  #allocation1 [shape = 'u32[144,128]{1,0:T(1,128)}', space=vmem, size = 0x12000, scoped, tag = 'internal scratch']
  %s0 = inlined_call_operand.vmem [shape: f32[32,32], index: 0, kind: input, shape index: {}]
  %s1 = inlined_call_operand.vmem [shape: f32[80,64], index: 1, kind: input, shape index: {}]
  %s2 = inlined_call_operand.hbm [shape: f32[32,32], index: 2, kind: output, shape index: {}]
  %s3 = sld [smem:[#allocation0]]
  $region18: #{tpu_custom_call.1} parent=0
    _
  %s5 = ssub.s32 1, %s3
  %s6 = scalar_select 0, %s5, %s3
  $region1: #{tpu_custom_call.1} parent=0
    #allocation2 [shape = 'u8[16384]{0}', space=vmem, size = 0x4000, scoped, tag = 'output window, operand 0, single buffered']
    #allocation3 [shape = 's32[1]{0}', space=sflag, size = 0x4, scoped, tag = 'scoped memory for tpu_custom_call.1']
    %7 = vsyncpa [#allocation3], 0
    // Predicated region
    $region2: #{tpu_custom_call.1} parent=1 // pred_check
      _
    $region3: #{tpu_custom_call.1} parent=1 // pred_check_branch
      %9 = sbr.rel (0) target = $region5
    $region4: #{tpu_custom_call.1} parent=1 // pred_region
      _
    $region5: #{tpu_custom_call.1} parent=1 // pred_fallthru
      _
    // Predicated region
    $region6: #{tpu_custom_call.1} parent=1 // pred_check
      _
    $region7: #{tpu_custom_call.1} parent=1 // pred_check_branch
      %11 = sbr.rel (0) target = $region9
    $region8: #{tpu_custom_call.1} parent=1 // pred_region
      _
    $region9: #{tpu_custom_call.1} parent=1 // pred_fallthru
      _
    %v13 = vld [vmem:[%s1] sm:$0x1]
    %v14 = vld [vmem:[%s1 + $0x1] sm:$0x1]
    %v15 = vld [vmem:[%s1 + $0x2] sm:$0x1]
    %v16 = vld [vmem:[%s1 + $0x3] sm:$0x1]
    %v17 = vld [vmem:[%s1 + $0x8] sm:$0xff]
    %v18 = vld [vmem:[%s1 + $0x10] sm:$0xff]
    %v19 = vld [vmem:[%s1 + $0x18] sm:$0xff]
    %v20 = vld [vmem:[%s1 + $0x20] sm:$0xff]
    %v21 = vld [vmem:[%s1 + $0x28] sm:$0x7f]
    %v22 = vld [vmem:[%s1 + $0x30] sm:$0xff]
    %v23 = vld [vmem:[%s1 + $0x38] sm:$0xff]
    %v24 = vld [vmem:[%s1 + $0x40] sm:$0xff]
    %v25 = vld [vmem:[%s1 + $0x48] sm:$0xff]
    %v26 = vld [vmem:[%s0] sm:$0xff]
    %v27 = vld [vmem:[%s0 + $0x8] sm:$0xff]
    %v28 = vld [vmem:[%s0 + $0x10] sm:$0xff]
    %v29 = vld [vmem:[%s0 + $0x18] sm:$0xff]
    %vm30 = vcmask 261120
    %v31 = vsel %vm30, %v26, 0.0
    %32 = vadd.xlane.f32.xlu0 %v31
    %v33 = vpop.xlane.xlu0 %32
    %v34 = vsel %vm30, %v27, 0.0
    %35 = vadd.xlane.f32.xlu0 %v34
    %v36 = vpop.xlane.xlu0 %35
    %v37 = vsel %vm30, %v28, 0.0
    %38 = vadd.xlane.f32.xlu0 %v37
    %v39 = vpop.xlane.xlu0 %38
    %v40 = vsel %vm30, %v29, 0.0
    %41 = vadd.xlane.f32.xlu0 %v40
    %v42 = vpop.xlane.xlu0 %41
    %v43 = vrcp.pop 32.0
    %v44 = vmul.f32 %v33, %v43
    %v45 = vmul.f32 %v36, %v43
    %v46 = vmul.f32 %v39, %v43
    %v47 = vmul.f32 %v42, %v43
    %v48 = vsub.f32 %v26, %v44
    %v49 = vsub.f32 %v27, %v45
    %v50 = vsub.f32 %v28, %v46
    %v51 = vsub.f32 %v29, %v47
    %v52 = vmul.f32 %v48, %v48
    %v53 = vmul.f32 %v49, %v49
    %v54 = vmul.f32 %v50, %v50
    %v55 = vmul.f32 %v51, %v51
    %v56 = vsel %vm30, %v52, 0.0
    %57 = vadd.xlane.f32.xlu0 %v56
    %v58 = vpop.xlane.xlu0 %57
    %v59 = vsel %vm30, %v53, 0.0
    %60 = vadd.xlane.f32.xlu0 %v59
    %v61 = vpop.xlane.xlu0 %60
    %v62 = vsel %vm30, %v54, 0.0
    %63 = vadd.xlane.f32.xlu0 %v62
    %v64 = vpop.xlane.xlu0 %63
    %v65 = vsel %vm30, %v55, 0.0
    %66 = vadd.xlane.f32.xlu0 %v65
    %v67 = vpop.xlane.xlu0 %66
    %v68 = vmul.f32 %v58, %v43
    %v69 = vmul.f32 %v61, %v43
    %v70 = vmul.f32 %v64, %v43
    %v71 = vmul.f32 %v67, %v43
    %v72 = vadd.f32 %v68, 1e-05
    %v73 = vadd.f32 %v69, 1e-05
    %v74 = vadd.f32 %v70, 1e-05
    %v75 = vadd.f32 %v71, 1e-05
    %v76 = vrsqrt.pop %v72
    %v77 = vrsqrt.pop %v73
    %v78 = vrsqrt.pop %v74
    %v79 = vrsqrt.pop %v75
    %v80 = vmul.f32 %v48, %v76
    %v81 = vmul.f32 %v49, %v77
    %v82 = vmul.f32 %v50, %v78
    %v83 = vmul.f32 %v51, %v79
    %v84 = vlaneseq
    %v85 = vshrl.u32 %v84, 7
    %v86 = vsub.s32 0, %v85
    %v87 = vrot.slane %v13, %v86
    %v88 = vmul.f32 %v80, %v87
    %v89 = vmul.f32 %v81, %v87
    %v90 = vmul.f32 %v82, %v87
    %v91 = vmul.f32 %v83, %v87
    %v92 = vlaneseq
    %v93 = vshrl.u32 %v92, 7
    %v94 = vsub.s32 0, %v93
    %v95 = vrot.slane %v14, %v94
    %v96 = vadd.f32 %v88, %v95
    %v97 = vadd.f32 %v89, %v95
    %v98 = vadd.f32 %v90, %v95
    %v99 = vadd.f32 %v91, %v95
    %v100 = vpack.c.bf16 %v97, %v96
    %v101 = vpack.c.bf16 %v99, %v98
    %v102 = vpack.c.bf16 %v18, %v17
    %v103 = vpack.c.bf16 %v20, %v19
    %v105 = vsel %vm30, %v100, 0
    %v108 = vsel %vm30, %v101, 0
    %110 = vmatprep.subr.bf16.mxu0 0
    %111 = vmatpush1.bf16.msra.mxu0 %v102
    %112 = vmatprep.subr.bf16.mxu0 0
    %113 = vmatpush1.bf16.msra.mxu0 %v103
    %114 = vmatprep.subr.bf16.mxu0 0
    %115 = vmatpush1.bf16.msra.mxu0 0
    %116 = vmatprep.subr.bf16.mxu0 0
    %117 = vmatpush1.bf16.msra.mxu0 0
    %118 = vmatprep.subr.bf16.mxu0 0
    %119 = vmatpush1.bf16.msra.mxu0 0
    %120 = vmatprep.subr.bf16.mxu0 0
    %121 = vmatpush1.bf16.msra.mxu0 0
    %122 = vmatprep.subr.bf16.mxu0 0
    %123 = vmatpush1.bf16.msra.mxu0 0
    %124 = vmatprep.subr.bf16.mxu0 0
    %125 = vmatpush1.bf16.msra.mxu0 0
    %126 = vmatprep.subr.bf16.mxu0 0
    %127 = vmatpush1.bf16.msra.mxu0 0
    %128 = vmatprep.subr.bf16.mxu0 0
    %129 = vmatpush1.bf16.msra.mxu0 0
    %130 = vmatprep.subr.bf16.mxu0 0
    %131 = vmatpush1.bf16.msra.mxu0 0
    %132 = vmatprep.subr.bf16.mxu0 0
    %133 = vmatpush1.bf16.msra.mxu0 0
    %134 = vmatprep.subr.bf16.mxu0 0
    %135 = vmatpush1.bf16.msra.mxu0 0
    %136 = vmatprep.subr.bf16.mxu0 0
    %137 = vmatpush1.bf16.msra.mxu0 0
    %138 = vmatprep.subr.bf16.mxu0 0
    %139 = vmatpush1.bf16.msra.mxu0 0
    %140 = vmatprep.subr.bf16.mxu0 0
    %141 = vmatpush1.bf16.msra.mxu0 0
    %142 = vmatprep.mubr.bf16.mxu0 0
    %143 = vmatmul.mubr.bf16.gmra.mrb[0].mxu0 %v105
    %v144 = vpop.f32.mrb[0].mxu0
    %v145 = vadd.f32 0.0, %v144
    %v146 = vpop.f32.mrb[0].mxu0
    %v147 = vpop.f32.mrb[0].mxu0
    %v148 = vadd.f32 0.0, %v147
    %v149 = vpop.f32.mrb[0].mxu0
    %150 = vmatprep.mubr.bf16.mxu0 0
    %151 = vmatmul.mubr.bf16.gmra.mrb[0].mxu0 %v108
    %v152 = vpop.f32.mrb[0].mxu0
    %v153 = vadd.f32 0.0, %v152
    %v154 = vpop.f32.mrb[0].mxu0
    %v155 = vpop.f32.mrb[0].mxu0
    %v156 = vadd.f32 0.0, %v155
    %v157 = vpop.f32.mrb[0].mxu0
    %158 = vdwg.mxu0
    %v159 = vxor.u32 %v145, 2147483648
    %v160 = vxor.u32 %v148, 2147483648
    %v161 = vxor.u32 %v153, 2147483648
    %v162 = vxor.u32 %v156, 2147483648
    %v163 = vmul.f32 %v159, 1.442695
    %v164 = vpow.pop %v163
    %v165 = vmul.f32 %v160, 1.442695
    %v166 = vpow.pop %v165
    %v167 = vmul.f32 %v161, 1.442695
    %v168 = vpow.pop %v167
    %v169 = vmul.f32 %v162, 1.442695
    %v170 = vpow.pop %v169
    %v171 = vadd.f32 %v164, 1.0
    %v172 = vadd.f32 %v166, 1.0
    %v173 = vadd.f32 %v168, 1.0
    %v174 = vadd.f32 %v170, 1.0
    %v175 = vrcp.pop %v171
    %v176 = vmul.f32 1.0, %v175
    %v177 = vrcp.pop %v172
    %v178 = vmul.f32 1.0, %v177
    %v179 = vrcp.pop %v173
    %v180 = vmul.f32 1.0, %v179
    %v181 = vrcp.pop %v174
    %v182 = vmul.f32 1.0, %v181
    %187 = vrot.lane.b32.xlu0 %v176, 96
    %v188 = vpop.permute.xlu0 %187
    %189 = vrot.lane.b32.xlu0 %v178, 96
    %v190 = vpop.permute.xlu0 %189
    %191 = vrot.lane.b32.xlu0 %v180, 96
    %v192 = vpop.permute.xlu0 %191
    %193 = vrot.lane.b32.xlu0 %v182, 96
    %v194 = vpop.permute.xlu0 %193
    %v199 = vmul.f32 %v145, %v188
    %v200 = vmul.f32 %v148, %v190
    %v201 = vmul.f32 %v153, %v192
    %v202 = vmul.f32 %v156, %v194
    %v203 = vlaneseq
    %v204 = vshrl.u32 %v203, 7
    %v205 = vadd.s32 %v204, 8
    %v206 = vadd.s32 %v204, 16
    %v207 = vadd.s32 %v204, 24
    %vm208 = vcmp.lt.s32.totalorder %v204, 0
    %v209 = vsub.s32 0, %v204
    %v210 = vsel %vm208, %v209, %v204
    %v211 = vshrl.u32 %v210, 4
    %v212 = vand.u32 %v210, 15
    %v213 = vsub.s32 0, %v212
    %v214 = vsel %vm208, %v213, %v212
    %vm215 = vcmp.lt.s32.totalorder %v205, 0
    %v216 = vsub.s32 0, %v205
    %v217 = vsel %vm215, %v216, %v205
    %v218 = vshrl.u32 %v217, 4
    %v219 = vand.u32 %v217, 15
    %v220 = vsub.s32 0, %v219
    %v221 = vsel %vm215, %v220, %v219
    %vm222 = vcmp.lt.s32.totalorder %v206, 0
    %v223 = vsub.s32 0, %v206
    %v224 = vsel %vm222, %v223, %v206
    %v225 = vshrl.u32 %v224, 4
    %v226 = vand.u32 %v224, 15
    %v227 = vsub.s32 0, %v226
    %v228 = vsel %vm222, %v227, %v226
    %vm229 = vcmp.lt.s32.totalorder %v207, 0
    %v230 = vsub.s32 0, %v207
    %v231 = vsel %vm229, %v230, %v207
    %v232 = vshrl.u32 %v231, 4
    %v233 = vand.u32 %v231, 15
    %v234 = vsub.s32 0, %v233
    %v235 = vsel %vm229, %v234, %v233
    %vm236 = vcmp.ne.s32.totalorder %v214, 0
    %vm237 = vcmp.ne.s32.totalorder %v221, 0
    %vm238 = vcmp.ne.s32.totalorder %v228, 0
    %vm239 = vcmp.ne.s32.totalorder %v235, 0
    %vm240 = vcmp.lt.s32.totalorder %v214, 0
    %vm241 = vcmp.lt.s32.totalorder %v221, 0
    %vm242 = vcmp.lt.s32.totalorder %v228, 0
    %vm243 = vcmp.lt.s32.totalorder %v235, 0
    %vm244 = vmand %vm240, %vm236
    %vm245 = vmand %vm241, %vm237
    %vm246 = vmand %vm242, %vm238
    %vm247 = vmand %vm243, %vm239
    %v248 = vadd.s32 %v214, 16
    %v249 = vadd.s32 %v221, 16
    %v250 = vadd.s32 %v228, 16
    %v251 = vadd.s32 %v235, 16
    %v252 = vsel %vm244, %v248, %v214
    %v253 = vsel %vm245, %v249, %v221
    %v254 = vsel %vm246, %v250, %v228
    %v255 = vsel %vm247, %v251, %v235
    %v256 = vlaneseq
    %v257 = vshrl.u32 %v256, 7
    %v258 = vsub.s32 3, %v257
    %v259 = vrot.slane %v21, %v258
    %v260 = vmul.f32 %v199, %v259
    %v261 = vmul.f32 %v200, %v259
    %v262 = vmul.f32 %v201, %v259
    %v263 = vmul.f32 %v202, %v259
    %v264 = vrot.slane %v199, 5
    %v265 = vrot.slane %v200, 5
    %v266 = vrot.slane %v201, 5
    %v267 = vrot.slane %v202, 5
    %vm268 = vcmp.lt.s32.totalorder %v204, 3
    %v269 = vsel %vm268, %v266, %v267
    %v270 = vsel %vm268, %v265, %v266
    %v271 = vsel %vm268, %v264, %v265
    %v272 = vsel %vm268, %v267, %v264
    %vm273 = vcmp.ge.s32.totalorder %v252, 3
    %vm274 = vcmp.ge.s32.totalorder %v253, 3
    %vm275 = vcmp.ge.s32.totalorder %v254, 3
    %vm276 = vcmp.ge.s32.totalorder %v255, 3
    %vm277 = vcmp.lt.s32.totalorder %v252, 16
    %vm278 = vcmp.lt.s32.totalorder %v253, 16
    %vm279 = vcmp.lt.s32.totalorder %v254, 16
    %vm280 = vcmp.lt.s32.totalorder %v255, 16
    %vm281 = vmand %vm273, %vm277
    %vm282 = vmand %vm274, %vm278
    %vm283 = vmand %vm275, %vm279
    %vm284 = vmand %vm276, %vm280
    %v285 = vsel %vm281, 1, 0
    %v286 = vsel %vm282, 1, 0
    %v287 = vsel %vm283, 1, 0
    %v288 = vsel %vm284, 1, 0
    %vm289 = vcmp.eq.s32.totalorder %v285, 1
    %vm290 = vcmp.eq.s32.totalorder %v286, 1
    %vm291 = vcmp.eq.s32.totalorder %v287, 1
    %vm292 = vcmp.eq.s32.totalorder %v288, 1
    %v293 = vsel %vm289, %v272, 0.0
    %v294 = vsel %vm290, %v271, 0.0
    %v295 = vsel %vm291, %v270, 0.0
    %v296 = vsel %vm292, %v269, 0.0
    %v297 = vlaneseq
    %v298 = vshrl.u32 %v297, 7
    %v299 = vsub.s32 0, %v298
    %v300 = vrot.slane %v21, %v299
    %v301 = vmul.f32 %v293, %v300
    %v302 = vmul.f32 %v294, %v300
    %v303 = vmul.f32 %v295, %v300
    %v304 = vmul.f32 %v296, %v300
    %v305 = vadd.f32 %v260, %v301
    %v306 = vadd.f32 %v261, %v302
    %v307 = vadd.f32 %v262, %v303
    %v308 = vadd.f32 %v263, %v304
    %v309 = vrot.slane %v199, 6
    %v310 = vrot.slane %v200, 6
    %v311 = vrot.slane %v201, 6
    %v312 = vrot.slane %v202, 6
    %vm313 = vcmp.lt.s32.totalorder %v204, 2
    %v314 = vsel %vm313, %v311, %v312
    %v315 = vsel %vm313, %v310, %v311
    %v316 = vsel %vm313, %v309, %v310
    %v317 = vsel %vm313, %v312, %v309
    %vm318 = vcmp.ge.s32.totalorder %v252, 2
    %vm319 = vcmp.ge.s32.totalorder %v253, 2
    %vm320 = vcmp.ge.s32.totalorder %v254, 2
    %vm321 = vcmp.ge.s32.totalorder %v255, 2
    %vm322 = vmand %vm318, %vm277
    %vm323 = vmand %vm319, %vm278
    %vm324 = vmand %vm320, %vm279
    %vm325 = vmand %vm321, %vm280
    %v326 = vsel %vm322, 1, 0
    %v327 = vsel %vm323, 1, 0
    %v328 = vsel %vm324, 1, 0
    %v329 = vsel %vm325, 1, 0
    %vm330 = vcmp.eq.s32.totalorder %v326, 1
    %vm331 = vcmp.eq.s32.totalorder %v327, 1
    %vm332 = vcmp.eq.s32.totalorder %v328, 1
    %vm333 = vcmp.eq.s32.totalorder %v329, 1
    %v334 = vsel %vm330, %v317, 0.0
    %v335 = vsel %vm331, %v316, 0.0
    %v336 = vsel %vm332, %v315, 0.0
    %v337 = vsel %vm333, %v314, 0.0
    %v338 = vlaneseq
    %v339 = vshrl.u32 %v338, 7
    %v340 = vsub.s32 1, %v339
    %v341 = vrot.slane %v21, %v340
    %v342 = vmul.f32 %v334, %v341
    %v343 = vmul.f32 %v335, %v341
    %v344 = vmul.f32 %v336, %v341
    %v345 = vmul.f32 %v337, %v341
    %v346 = vadd.f32 %v305, %v342
    %v347 = vadd.f32 %v306, %v343
    %v348 = vadd.f32 %v307, %v344
    %v349 = vadd.f32 %v308, %v345
    %v350 = vrot.slane %v199, 7
    %v351 = vrot.slane %v200, 7
    %v352 = vrot.slane %v201, 7
    %v353 = vrot.slane %v202, 7
    %vm354 = vcmp.lt.s32.totalorder %v204, 1
    %v355 = vsel %vm354, %v352, %v353
    %v356 = vsel %vm354, %v351, %v352
    %v357 = vsel %vm354, %v350, %v351
    %v358 = vsel %vm354, %v353, %v350
    %vm359 = vcmp.ge.s32.totalorder %v252, 1
    %vm360 = vcmp.ge.s32.totalorder %v253, 1
    %vm361 = vcmp.ge.s32.totalorder %v254, 1
    %vm362 = vcmp.ge.s32.totalorder %v255, 1
    %vm363 = vmand %vm359, %vm277
    %vm364 = vmand %vm360, %vm278
    %vm365 = vmand %vm361, %vm279
    %vm366 = vmand %vm362, %vm280
    %v367 = vsel %vm363, 1, 0
    %v368 = vsel %vm364, 1, 0
    %v369 = vsel %vm365, 1, 0
    %v370 = vsel %vm366, 1, 0
    %vm371 = vcmp.eq.s32.totalorder %v367, 1
    %vm372 = vcmp.eq.s32.totalorder %v368, 1
    %vm373 = vcmp.eq.s32.totalorder %v369, 1
    %vm374 = vcmp.eq.s32.totalorder %v370, 1
    %v375 = vsel %vm371, %v358, 0.0
    %v376 = vsel %vm372, %v357, 0.0
    %v377 = vsel %vm373, %v356, 0.0
    %v378 = vsel %vm374, %v355, 0.0
    %v379 = vlaneseq
    %v380 = vshrl.u32 %v379, 7
    %v381 = vsub.s32 2, %v380
    %v382 = vrot.slane %v21, %v381
    %v383 = vmul.f32 %v375, %v382
    %v384 = vmul.f32 %v376, %v382
    %v385 = vmul.f32 %v377, %v382
    %v386 = vmul.f32 %v378, %v382
    %v387 = vadd.f32 %v346, %v383
    %v388 = vadd.f32 %v347, %v384
    %v389 = vadd.f32 %v348, %v385
    %v390 = vadd.f32 %v349, %v386
    %v391 = vrot.slane %v199, 1
    %v392 = vrot.slane %v200, 1
    %v393 = vrot.slane %v201, 1
    %v394 = vrot.slane %v202, 1
    %vm395 = vcmp.lt.s32.totalorder %v204, 7
    %v396 = vsel %vm395, %v393, %v394
    %v397 = vsel %vm395, %v392, %v393
    %v398 = vsel %vm395, %v391, %v392
    %v399 = vsel %vm395, %v394, %v391
    %vm400 = vcmp.ge.s32.totalorder %v252, 0
    %vm401 = vcmp.ge.s32.totalorder %v253, 0
    %vm402 = vcmp.ge.s32.totalorder %v254, 0
    %vm403 = vcmp.ge.s32.totalorder %v255, 0
    %vm404 = vcmp.lt.s32.totalorder %v252, 15
    %vm405 = vcmp.lt.s32.totalorder %v253, 15
    %vm406 = vcmp.lt.s32.totalorder %v254, 15
    %vm407 = vcmp.lt.s32.totalorder %v255, 15
    %vm408 = vmand %vm400, %vm404
    %vm409 = vmand %vm401, %vm405
    %vm410 = vmand %vm402, %vm406
    %vm411 = vmand %vm403, %vm407
    %v412 = vsel %vm408, 1, 0
    %v413 = vsel %vm409, 1, 0
    %v414 = vsel %vm410, 1, 0
    %v415 = vsel %vm411, 1, 0
    %vm416 = vcmp.eq.s32.totalorder %v412, 1
    %vm417 = vcmp.eq.s32.totalorder %v413, 1
    %vm418 = vcmp.eq.s32.totalorder %v414, 1
    %vm419 = vcmp.eq.s32.totalorder %v415, 1
    %v420 = vsel %vm416, %v398, 0.0
    %v421 = vsel %vm417, %v397, 0.0
    %v422 = vsel %vm418, %v396, 0.0
    %v423 = vsel %vm419, %v399, 0.0
    %v424 = vlaneseq
    %v425 = vshrl.u32 %v424, 7
    %v426 = vsub.s32 4, %v425
    %v427 = vrot.slane %v21, %v426
    %v428 = vmul.f32 %v420, %v427
    %v429 = vmul.f32 %v421, %v427
    %v430 = vmul.f32 %v422, %v427
    %v431 = vmul.f32 %v423, %v427
    %v432 = vadd.f32 %v387, %v428
    %v433 = vadd.f32 %v388, %v429
    %v434 = vadd.f32 %v389, %v430
    %v435 = vadd.f32 %v390, %v431
    %v436 = vrot.slane %v199, 2
    %v437 = vrot.slane %v200, 2
    %v438 = vrot.slane %v201, 2
    %v439 = vrot.slane %v202, 2
    %vm440 = vcmp.lt.s32.totalorder %v204, 6
    %v441 = vsel %vm440, %v438, %v439
    %v442 = vsel %vm440, %v437, %v438
    %v443 = vsel %vm440, %v436, %v437
    %v444 = vsel %vm440, %v439, %v436
    %vm445 = vcmp.lt.s32.totalorder %v252, 14
    %vm446 = vcmp.lt.s32.totalorder %v253, 14
    %vm447 = vcmp.lt.s32.totalorder %v254, 14
    %vm448 = vcmp.lt.s32.totalorder %v255, 14
    %vm449 = vmand %vm400, %vm445
    %vm450 = vmand %vm401, %vm446
    %vm451 = vmand %vm402, %vm447
    %vm452 = vmand %vm403, %vm448
    %v453 = vsel %vm449, 1, 0
    %v454 = vsel %vm450, 1, 0
    %v455 = vsel %vm451, 1, 0
    %v456 = vsel %vm452, 1, 0
    %vm457 = vcmp.eq.s32.totalorder %v453, 1
    %vm458 = vcmp.eq.s32.totalorder %v454, 1
    %vm459 = vcmp.eq.s32.totalorder %v455, 1
    %vm460 = vcmp.eq.s32.totalorder %v456, 1
    %v461 = vsel %vm457, %v443, 0.0
    %v462 = vsel %vm458, %v442, 0.0
    %v463 = vsel %vm459, %v441, 0.0
    %v464 = vsel %vm460, %v444, 0.0
    %v465 = vlaneseq
    %v466 = vshrl.u32 %v465, 7
    %v467 = vsub.s32 5, %v466
    %v468 = vrot.slane %v21, %v467
    %v469 = vmul.f32 %v461, %v468
    %v470 = vmul.f32 %v462, %v468
    %v471 = vmul.f32 %v463, %v468
    %v472 = vmul.f32 %v464, %v468
    %v473 = vadd.f32 %v432, %v469
    %v474 = vadd.f32 %v433, %v470
    %v475 = vadd.f32 %v434, %v471
    %v476 = vadd.f32 %v435, %v472
    %v477 = vrot.slane %v199, 3
    %v478 = vrot.slane %v200, 3
    %v479 = vrot.slane %v201, 3
    %v480 = vrot.slane %v202, 3
    %vm481 = vcmp.lt.s32.totalorder %v204, 5
    %v482 = vsel %vm481, %v479, %v480
    %v483 = vsel %vm481, %v478, %v479
    %v484 = vsel %vm481, %v477, %v478
    %v485 = vsel %vm481, %v480, %v477
    %vm486 = vcmp.lt.s32.totalorder %v252, 13
    %vm487 = vcmp.lt.s32.totalorder %v253, 13
    %vm488 = vcmp.lt.s32.totalorder %v254, 13
    %vm489 = vcmp.lt.s32.totalorder %v255, 13
    %vm490 = vmand %vm400, %vm486
    %vm491 = vmand %vm401, %vm487
    %vm492 = vmand %vm402, %vm488
    %vm493 = vmand %vm403, %vm489
    %v494 = vsel %vm490, 1, 0
    %v495 = vsel %vm491, 1, 0
    %v496 = vsel %vm492, 1, 0
    %v497 = vsel %vm493, 1, 0
    %vm498 = vcmp.eq.s32.totalorder %v494, 1
    %vm499 = vcmp.eq.s32.totalorder %v495, 1
    %vm500 = vcmp.eq.s32.totalorder %v496, 1
    %vm501 = vcmp.eq.s32.totalorder %v497, 1
    %v502 = vsel %vm498, %v484, 0.0
    %v503 = vsel %vm499, %v483, 0.0
    %v504 = vsel %vm500, %v482, 0.0
    %v505 = vsel %vm501, %v485, 0.0
    %v506 = vlaneseq
    %v507 = vshrl.u32 %v506, 7
    %v508 = vsub.s32 6, %v507
    %v509 = vrot.slane %v21, %v508
    %v510 = vmul.f32 %v502, %v509
    %v511 = vmul.f32 %v503, %v509
    %v512 = vmul.f32 %v504, %v509
    %v513 = vmul.f32 %v505, %v509
    %v514 = vadd.f32 %v473, %v510
    %v515 = vadd.f32 %v474, %v511
    %v516 = vadd.f32 %v475, %v512
    %v517 = vadd.f32 %v476, %v513
    %v518 = vsel %vm30, %v514, 0.0
    %v519 = vsel %vm30, %v515, 0.0
    %v520 = vadd.f32 %v518, %v519
    %v521 = vsel %vm30, %v516, 0.0
    %v522 = vadd.f32 %v520, %v521
    %v523 = vsel %vm30, %v517, 0.0
    %v524 = vadd.f32 %v522, %v523
    %v525 = vrot.slane %v524, 4
    %v526 = vadd.f32 %v524, %v525
    %v527 = vrot.slane %v526, 2
    %v528 = vadd.f32 %v526, %v527
    %v529 = vrot.slane %v528, 1
    %v530 = vadd.f32 %v528, %v529
    %v531 = vmul.f32 %v530, %v43
    %v532 = vsub.f32 %v514, %v531
    %v533 = vsub.f32 %v515, %v531
    %v534 = vsub.f32 %v516, %v531
    %v535 = vsub.f32 %v517, %v531
    %v536 = vmul.f32 %v532, %v532
    %v537 = vmul.f32 %v533, %v533
    %v538 = vmul.f32 %v534, %v534
    %v539 = vmul.f32 %v535, %v535
    %v540 = vsel %vm30, %v536, 0.0
    %v541 = vsel %vm30, %v537, 0.0
    %v542 = vadd.f32 %v540, %v541
    %v543 = vsel %vm30, %v538, 0.0
    %v544 = vadd.f32 %v542, %v543
    %v545 = vsel %vm30, %v539, 0.0
    %v546 = vadd.f32 %v544, %v545
    %v547 = vrot.slane %v546, 4
    %v548 = vadd.f32 %v546, %v547
    %v549 = vrot.slane %v548, 2
    %v550 = vadd.f32 %v548, %v549
    %v551 = vrot.slane %v550, 1
    %v552 = vadd.f32 %v550, %v551
    %v553 = vmul.f32 %v552, %v43
    %v554 = vadd.f32 %v553, 1e-05
    %v555 = vrsqrt.pop %v554
    %v556 = vmul.f32 %v532, %v555
    %v557 = vmul.f32 %v533, %v555
    %v558 = vmul.f32 %v534, %v555
    %v559 = vmul.f32 %v535, %v555
    %v560 = vlaneseq
    %v561 = vshrl.u32 %v560, 7
    %v562 = vsub.s32 0, %v561
    %v563 = vrot.slane %v15, %v562
    %v564 = vmul.f32 %v556, %v563
    %v565 = vmul.f32 %v557, %v563
    %v566 = vmul.f32 %v558, %v563
    %v567 = vmul.f32 %v559, %v563
    %v568 = vlaneseq
    %v569 = vshrl.u32 %v568, 7
    %v570 = vsub.s32 0, %v569
    %v571 = vrot.slane %v16, %v570
    %v572 = vadd.f32 %v564, %v571
    %v573 = vadd.f32 %v565, %v571
    %v574 = vadd.f32 %v566, %v571
    %v575 = vadd.f32 %v567, %v571
    %v576 = vxor.u32 %v572, 2147483648
    %v577 = vxor.u32 %v573, 2147483648
    %v578 = vxor.u32 %v574, 2147483648
    %v579 = vxor.u32 %v575, 2147483648
    %v580 = vmul.f32 %v576, 1.442695
    %v581 = vpow.pop %v580
    %v582 = vmul.f32 %v577, 1.442695
    %v583 = vpow.pop %v582
    %v584 = vmul.f32 %v578, 1.442695
    %v585 = vpow.pop %v584
    %v586 = vmul.f32 %v579, 1.442695
    %v587 = vpow.pop %v586
    %v588 = vadd.f32 %v581, 1.0
    %v589 = vadd.f32 %v583, 1.0
    %v590 = vadd.f32 %v585, 1.0
    %v591 = vadd.f32 %v587, 1.0
    %v592 = vrcp.pop %v588
    %v593 = vmul.f32 1.0, %v592
    %v594 = vrcp.pop %v589
    %v595 = vmul.f32 1.0, %v594
    %v596 = vrcp.pop %v590
    %v597 = vmul.f32 1.0, %v596
    %v598 = vrcp.pop %v591
    %v599 = vmul.f32 1.0, %v598
    %v600 = vmul.f32 %v572, %v593
    %v601 = vmul.f32 %v573, %v595
    %v602 = vmul.f32 %v574, %v597
    %v603 = vmul.f32 %v575, %v599
    %v604 = vpack.c.bf16 %v601, %v600
    %v605 = vpack.c.bf16 %v603, %v602
    %v606 = vpack.c.bf16 %v23, %v22
    %v607 = vpack.c.bf16 %v25, %v24
    %v609 = vsel %vm30, %v604, 0
    %v612 = vsel %vm30, %v605, 0
    %614 = vmatprep.subr.bf16.mxu0 0
    %615 = vmatpush1.bf16.msra.mxu0 %v606
    %616 = vmatprep.subr.bf16.mxu0 0
    %617 = vmatpush1.bf16.msra.mxu0 %v607
    %618 = vmatprep.subr.bf16.mxu0 0
    %619 = vmatpush1.bf16.msra.mxu0 0
    %620 = vmatprep.subr.bf16.mxu0 0
    %621 = vmatpush1.bf16.msra.mxu0 0
    %622 = vmatprep.subr.bf16.mxu0 0
    %623 = vmatpush1.bf16.msra.mxu0 0
    %624 = vmatprep.subr.bf16.mxu0 0
    %625 = vmatpush1.bf16.msra.mxu0 0
    %626 = vmatprep.subr.bf16.mxu0 0
    %627 = vmatpush1.bf16.msra.mxu0 0
    %628 = vmatprep.subr.bf16.mxu0 0
    %629 = vmatpush1.bf16.msra.mxu0 0
    %630 = vmatprep.subr.bf16.mxu0 0
    %631 = vmatpush1.bf16.msra.mxu0 0
    %632 = vmatprep.subr.bf16.mxu0 0
    %633 = vmatpush1.bf16.msra.mxu0 0
    %634 = vmatprep.subr.bf16.mxu0 0
    %635 = vmatpush1.bf16.msra.mxu0 0
    %636 = vmatprep.subr.bf16.mxu0 0
    %637 = vmatpush1.bf16.msra.mxu0 0
    %638 = vmatprep.subr.bf16.mxu0 0
    %639 = vmatpush1.bf16.msra.mxu0 0
    %640 = vmatprep.subr.bf16.mxu0 0
    %641 = vmatpush1.bf16.msra.mxu0 0
    %642 = vmatprep.subr.bf16.mxu0 0
    %643 = vmatpush1.bf16.msra.mxu0 0
    %644 = vmatprep.subr.bf16.mxu0 0
    %645 = vmatpush1.bf16.msra.mxu0 0
    %646 = vmatprep.mubr.bf16.mxu0 0
    %647 = vmatmul.mubr.bf16.gmra.mrb[0].mxu0 %v609
    %v648 = vpop.f32.mrb[0].mxu0
    %v649 = vadd.f32 0.0, %v648
    %v650 = vpop.f32.mrb[0].mxu0
    %v651 = vpop.f32.mrb[0].mxu0
    %v652 = vadd.f32 0.0, %v651
    %v653 = vpop.f32.mrb[0].mxu0
    %654 = vmatprep.mubr.bf16.mxu0 0
    %655 = vmatmul.mubr.bf16.gmra.mrb[0].mxu0 %v612
    %v656 = vpop.f32.mrb[0].mxu0
    %v657 = vadd.f32 0.0, %v656
    %v658 = vpop.f32.mrb[0].mxu0
    %v659 = vpop.f32.mrb[0].mxu0
    %v660 = vadd.f32 0.0, %v659
    %v661 = vpop.f32.mrb[0].mxu0
    %662 = vdwg.mxu0
    %663 = vst.msk [vmem:[#allocation2] sm:$0xff] %vm30, %v649
    %664 = vst.msk [vmem:[#allocation2 + $0x8] sm:$0xff] %vm30, %v652
    %665 = vst.msk [vmem:[#allocation2 + $0x10] sm:$0xff] %vm30, %v657
    %666 = vst.msk [vmem:[#allocation2 + $0x18] sm:$0xff] %vm30, %v660
    // Predicated region
    $region10: #{tpu_custom_call.1} parent=1 // pred_check
      _
    $region11: #{tpu_custom_call.1} parent=1 // pred_check_branch
      %668 = sbr.rel (0) target = $region13
    $region12: #{tpu_custom_call.1} parent=1 // pred_region
      %s670 = ssub.s32 512, 512
      %671 = vsyncadd [#allocation3], %s670
      %s672 = sshll.u32 [#allocation2], 4
      %s673 = int_to_ptr.vmem [resolvable:$true] %s672
      %678 = dma.vmem_to_hbm [thread:$0]  %s673, 512, %s2, [#allocation3], 128, 128, 8
    $region13: #{tpu_custom_call.1} parent=1 // pred_fallthru
      _
    // Predicated region
    $region14: #{tpu_custom_call.1} parent=1 // pred_check
      _
    $region15: #{tpu_custom_call.1} parent=1 // pred_check_branch
      %680 = sbr.rel (0) target = $region17
    $region16: #{tpu_custom_call.1} parent=1 // pred_region
      %681 = dma.done [#allocation3], 512
    $region17: #{tpu_custom_call.1} parent=1 // pred_fallthru
      _
    %682 = vsyncpa [#allocation3], 1

</llo_original>
